<compile_context>
chip_gen: v6e
topology: v6e:2x2x1
jax: 0.10.0
libtpu: 0.0.40
codegen_flags: <defaults>
</compile_context>

<pallas_src>
import jax
import jax.numpy as jnp
import numpy as np
from jax.experimental import pallas as pl
from jax.experimental.pallas import tpu as pltpu

_PAD_SYMBOL = -1  # sentinel symbol for padded atoms; must not match any real species id


# ----------------------------------------------------------------------------
# Pallas kernel: per-atom MLP energies + dE/ddesc.
# 1-D grid over atom tiles; species loop unrolled in-kernel with all species'
# weights VMEM-resident.
# ----------------------------------------------------------------------------
def _bp_energy_kernel(spe_ref,        # (NS,) int32, SMEM (scalar prefetch)
                      sym_ref,        # (TILE, 1)   int32
                      desc_ref,       # (TILE, NOP) bf16
                      w1_ref,         # (NS, NOP, HP) bf16  -- all species, resident
                      w1t_ref,        # (NS, HP, NOP) bf16
                      b1_ref,         # (NS, 1, HP) f32
                      w2_ref,         # (NS, 1, HP) f32  (row form of the (HP,1) output weight)
                      b2_ref,         # (NS, 1, 1)  f32
                      energies_ref,   # (TILE, 1)   f32  out
                      grad_ref):      # (TILE, NOP) bf16 out (dE_i/ddesc_i)
    d = desc_ref[...]                                    # (TILE, NOP) bf16
    sym = sym_ref[...]                                   # (TILE, 1) int32
    ns = w1_ref.shape[0]

    e_acc = jnp.zeros(energies_ref.shape, jnp.float32)
    g_acc = jnp.zeros(grad_ref.shape, jnp.float32)

    # Unrolled static loop over species (NS is small).  Every atom runs NS MLP
    # passes and only the matching one contributes via the mask.
    # TODO(synk): for large NS, sort atoms by species in the wrapper and use
    # scalar-prefetched offsets (MoE-style) so each tile runs exactly one species.
    for s in range(ns):
        # forward: Linear -> SiLU -> Linear
        h = jnp.dot(d, w1_ref[s], preferred_element_type=jnp.float32) + b1_ref[s]  # (TILE, HP) f32
        sig = 1.0 / (1.0 + jnp.exp(-h))                  # exp on EUP; exact recip keeps numerics tight
        act = h * sig                                    # SiLU, f32

        w2 = w2_ref[s]                                   # (1, HP) f32
        # Cross-lane reduction (XLU) instead of a lane-1-output MXU matmul.
        e = jnp.sum(act * w2, axis=-1, keepdims=True) + b2_ref[s]                  # (TILE, 1)

        # analytic dE/ddesc:  d SiLU / dh = sigma + silu(h) * (1 - sigma)
        dsilu = sig + act * (1.0 - sig)
        p = (dsilu * w2).astype(jnp.bfloat16)            # bf16 MXU LHS
        g = jnp.dot(p, w1t_ref[s], preferred_element_type=jnp.float32)             # (TILE, NOP)

        # Species mask from the int32 symbols column vs the SMEM species id.
        m = (sym == spe_ref[s]).astype(jnp.float32)      # (TILE, 1)
        e_acc = e_acc + m * e
        g_acc = g_acc + m * g

    energies_ref[...] = e_acc
    grad_ref[...] = g_acc.astype(grad_ref.dtype)         # bf16 writeback halves grad HBM bytes


def bp_energy_pallas(spe_vals, sym_col, desc_p, w1p, w1tp, b1p, w2p, b2p, *,
                     atom_tile):
    nta_p, nop = desc_p.shape
    ns, _, hp = w1p.shape
    assert nta_p % atom_tile == 0

    def atom_map(i, spe_ref):         # atom-tiled arrays (prefetch ref unused)
        return (i, 0)

    def resident_map(i, spe_ref):     # whole all-species weight block, fetched once
        return (0, 0, 0)

    out_shape = (
        jax.ShapeDtypeStruct((nta_p, 1), jnp.float32),    # per-atom energies
        jax.ShapeDtypeStruct((nta_p, nop), jnp.bfloat16), # dE_i / d desc_i
    )
    grid_spec = pltpu.PrefetchScalarGridSpec(
        num_scalar_prefetch=1,                            # species id table -> SMEM
        grid=(nta_p // atom_tile,),
        in_specs=[
            pl.BlockSpec((atom_tile, 1), atom_map),       # symbols column (int32)
            pl.BlockSpec((atom_tile, nop), atom_map),     # descriptors (bf16)
            pl.BlockSpec((ns, nop, hp), resident_map),    # w1   (bf16), resident
            pl.BlockSpec((ns, hp, nop), resident_map),    # w1^T (bf16), resident
            pl.BlockSpec((ns, 1, hp), resident_map),      # b1   (f32),  resident
            pl.BlockSpec((ns, 1, hp), resident_map),      # w2   (f32),  resident
            pl.BlockSpec((ns, 1, 1), resident_map),       # b2   (f32),  resident
        ],
        out_specs=(
            pl.BlockSpec((atom_tile, 1), atom_map),
            pl.BlockSpec((atom_tile, nop), atom_map),
        ),
    )
    return pl.pallas_call(
        _bp_energy_kernel,
        out_shape=out_shape,
        grid_spec=grid_spec,
        compiler_params=pltpu.CompilerParams(
            dimension_semantics=("parallel",),
        ),
    )(spe_vals, sym_col, desc_p, w1p, w1tp, b1p, w2p, b2p)


# ----------------------------------------------------------------------------
# Differentiable descriptor stand-in (plain JAX glue)
# ----------------------------------------------------------------------------
def radial_descriptor(positions, crystalidx, mu, eta, cutoff):
    # TODO(synk): the REANN descriptor is an external submodule with no code
    # available; a smooth Gaussian radial-basis descriptor (same-crystal pairs,
    # cosine cutoff) is used as a differentiable stand-in. cells / pbcs unused.
    # TODO(synk): this O(NTA^2 * NO) descriptor (and its VJP) dominates at
    # production NTA; a tiled / neighbor-list descriptor kernel is the next step.
    nta = positions.shape[0]
    diff = positions[:, None, :] - positions[None, :, :]        # (NTA, NTA, 3)
    r = jnp.sqrt(jnp.sum(diff * diff, axis=-1) + 1e-12)         # (NTA, NTA)
    same = crystalidx[:, None] == crystalidx[None, :]
    pair = same & (~jnp.eye(nta, dtype=bool))
    fc = 0.5 * (jnp.cos(jnp.pi * jnp.minimum(r, cutoff) / cutoff) + 1.0)
    w = jnp.where(pair, fc, 0.0)
    basis = jnp.exp(-eta * (r[..., None] - mu[None, None, :]) ** 2)
    return jnp.sum(basis * w[..., None], axis=1)                # (NTA, NO)


# ----------------------------------------------------------------------------
# Full forward: (energies, energy, forces) like the PyTorch module
# ----------------------------------------------------------------------------
def _round_up(x, m):
    return ((x + m - 1) // m) * m


def potential_forward(params, symbols, positions, cells, pbcs,
                      energyidx, crystalidx, cutoff=6.0, atom_tile=2048):
    w1, b1, w2, b2 = params["w1"], params["b1"], params["w2"], params["b2"]
    ns, no, hid = w1.shape
    nta = positions.shape[0]

    species_list = tuple(int(s) for s in params["species"])
    # Duplicate species would double-count energy/grad in the accumulating kernel.
    assert len(set(species_list)) == len(species_list), "species must be unique"
    assert _PAD_SYMBOL not in species_list, "species id collides with pad sentinel -1"

    def desc_fn(pos):
        return radial_descriptor(pos, crystalidx, params["mu"], params["eta"], cutoff)

    desc, desc_vjp = jax.vjp(desc_fn, positions)

    # Padding: HID -> multiple of 128 (lane-dense matmuls); NO -> multiple of 16
    # only (bf16 sublane tile), so desc reads / grad writes carry no 128-lane waste.
    nop = _round_up(no, 16)
    hp = _round_up(hid, 128)

    # Tile sizing: as large as practical, but keep >= 2 atom tiles so the
    # "parallel" axis can shard across TensorCores (v7x megacore).
    atom_tile = _round_up(max(8, min(atom_tile, max(8, _round_up((nta + 1) // 2, 8)))), 8)
    nta_p = _round_up(nta, atom_tile)

    desc_p = (jnp.zeros((nta_p, nop), jnp.float32)
              .at[:nta, :no].set(desc).astype(jnp.bfloat16))
    # Padded atoms get the sentinel symbol (matches no species) -> zero energy/grad.
    sym_col = (jnp.full((nta_p, 1), _PAD_SYMBOL, jnp.int32)
               .at[:nta, 0].set(symbols.astype(jnp.int32)))

    # Zero padding of weights => padded features / hidden units contribute exactly 0.
    w1p = (jnp.zeros((ns, nop, hp), jnp.float32)
           .at[:, :no, :hid].set(w1).astype(jnp.bfloat16))
    w1tp = jnp.swapaxes(w1p, 1, 2)                                # (NS, HP, NOP) bf16
    b1p = jnp.zeros((ns, 1, hp), jnp.float32).at[:, :, :hid].set(b1)
    w2p = jnp.zeros((ns, 1, hp), jnp.float32).at[:, :, :hid].set(w2)
    b2p = b2.astype(jnp.float32)

    spe_vals = jnp.asarray(species_list, jnp.int32)

    energies_p, grad_p = bp_energy_pallas(
        spe_vals, sym_col, desc_p, w1p, w1tp, b1p, w2p, b2p, atom_tile=atom_tile)

    energies = energies_p[:nta, 0]
    dE_ddesc = grad_p[:nta, :no].astype(jnp.float32)

    # Per-crystal reduction: energy[c] = sum_{i: crystalidx[i] == energyidx[c]} E_i.
    # Tiny work -> done in plain JAX, outside the kernel.
    cry_mask = (energyidx[:, None] == crystalidx[None, :]).astype(jnp.float32)  # (NC, NTA)
    energy = cry_mask @ energies

    # forces = +d(sum(energy))/d(positions) (matches the reference module's sign;
    # physical force would be the negation).
    count = jnp.sum(cry_mask, axis=0)                       # (NTA,)
    forces = desc_vjp(count[:, None] * dE_ddesc)[0]

    return energies, energy, forces


# ----------------------------------------------------------------------------
# Pure-JAX reference (autodiff) for the correctness check.
# Operands fed to the MXU in the kernel are bf16; the reference rounds the same
# operands to bf16 (straight-through for the descriptor so cotangents stay f32)
# to make the comparison tight while remaining an independent autodiff check.
# ----------------------------------------------------------------------------
def _bf16_round(x):
    return x.astype(jnp.bfloat16).astype(jnp.float32)


def _bf16_round_ste(x):
    xr = _bf16_round(x)
    return x + jax.lax.stop_gradient(xr - x)


def ref_forward(params, symbols, positions, cells, pbcs,
                energyidx, crystalidx, cutoff=6.0):
    def total_energy(pos):
        D = _bf16_round_ste(
            radial_descriptor(pos, crystalidx, params["mu"], params["eta"], cutoff))
        e = jnp.zeros((symbols.shape[0],), jnp.float32)
        for si, s in enumerate(params["species"]):
            w1 = _bf16_round(params["w1"][si])
            h = D @ w1 + params["b1"][si][0]
            a = jax.nn.silu(h)
            es = a @ params["w2"][si][0] + params["b2"][si][0, 0]
            e = jnp.where(symbols == s, es, e)
        cmask = (energyidx[:, None] == crystalidx[None, :]).astype(jnp.float32)
        energy = cmask @ e
        return jnp.sum(energy), (e, energy)

    (_, (e, energy)), forces = jax.value_and_grad(total_energy, has_aux=True)(positions)
    return e, energy, forces


# ----------------------------------------------------------------------------
# Deterministic parameter init
# (shapes per module __init__: Linear(NO, int(NO*1.3)) -> SiLU -> Linear(., 1))
# ----------------------------------------------------------------------------
def init_params(key, species, no, hidden, cutoff):
    ns = len(species)
    k1, k2, k3, k4 = jax.random.split(key, 4)
    lim1 = 1.0 / float(np.sqrt(no))
    lim2 = 1.0 / float(np.sqrt(hidden))
    w1 = jax.random.uniform(k1, (ns, no, hidden), jnp.float32, -lim1, lim1)
    b1 = jax.random.uniform(k2, (ns, 1, hidden), jnp.float32, -lim1, lim1)
    w2 = jax.random.uniform(k3, (ns, 1, hidden), jnp.float32, -lim2, lim2)
    b2 = jax.random.uniform(k4, (ns, 1, 1), jnp.float32, -lim2, lim2)
    mu = jnp.linspace(0.5, cutoff, no).astype(jnp.float32)
    eta = jnp.float32(4.0)
    return dict(species=tuple(species), w1=w1, b1=b1, w2=w2, b2=b2, mu=mu, eta=eta)


if __name__ == "__main__":
    NTA, NO, NS, NC = 48, 32, 2, 3
    HID = int(NO * 1.3)          # 41, as in the module
    CUTOFF = 6.0
    species = (0, 1)
    ATOM_TILE = 16               # small tile so the demo exercises multiple atom
                                 # tiles; production default is 2048 (wrapper
                                 # clamps to keep >= 2 tiles for v7x megacore)

    key = jax.random.PRNGKey(0)
    k_pos, k_par, k_sym = jax.random.split(key, 3)

    positions = jax.random.uniform(k_pos, (NTA, 3), jnp.float32, 0.0, 6.0)
    symbols = jax.random.randint(k_sym, (NTA,), 0, NS).astype(jnp.int32)
    crystalidx = jnp.repeat(jnp.arange(NC, dtype=jnp.int32), NTA // NC)
    energyidx = jnp.arange(NC, dtype=jnp.int32)
    cells = jnp.tile(10.0 * jnp.eye(3, dtype=jnp.float32)[None], (NC, 1, 1))
    pbcs = jnp.zeros((NC, 3), dtype=bool)

    params = init_params(k_par, species, NO, HID, CUTOFF)

    energies, energy, forces = potential_forward(
        params, symbols, positions, cells, pbcs, energyidx, crystalidx,
        cutoff=CUTOFF, atom_tile=ATOM_TILE)
    jax.block_until_ready((energies, energy, forces))

    # sanity: shapes match the PyTorch return contract
    assert energies.shape == (NTA,)
    assert energy.shape == (NC,)
    assert forces.shape == (NTA, 3)

    # correctness vs pure-JAX autodiff reference
    e_ref, en_ref, f_ref = ref_forward(params, symbols, positions, cells, pbcs,
                                       energyidx, crystalidx, CUTOFF)
    jax.block_until_ready((e_ref, en_ref, f_ref))

    np.testing.assert_allclose(np.asarray(energies), np.asarray(e_ref),
                               rtol=1e-3, atol=1e-3)
    np.testing.assert_allclose(np.asarray(energy), np.asarray(en_ref),
                               rtol=1e-3, atol=1e-3)
    f_scale = float(np.max(np.abs(np.asarray(f_ref)))) + 1e-6
    np.testing.assert_allclose(np.asarray(forces), np.asarray(f_ref),
                               rtol=2e-2, atol=2e-2 * f_scale)

    print("KERNEL_OK")
</pallas_src>

<mosaic_0001>
module attributes {stable_mosaic.version = 11 : i64} {
  func.func @_bp_energy_kernel(%arg0: i32, %arg1: memref<2xi32, #tpu.memory_space<smem>>, %arg2: memref<16x1xi32, #tpu.memory_space<vmem>>, %arg3: memref<16x32xbf16, #tpu.memory_space<vmem>>, %arg4: memref<2x32x128xbf16, #tpu.memory_space<vmem>>, %arg5: memref<2x128x32xbf16, #tpu.memory_space<vmem>>, %arg6: memref<2x1x128xf32, #tpu.memory_space<vmem>>, %arg7: memref<2x1x128xf32, #tpu.memory_space<vmem>>, %arg8: memref<2x1x1xf32, #tpu.memory_space<vmem>>, %arg9: memref<16x1xf32, #tpu.memory_space<vmem>>, %arg10: memref<16x32xbf16, #tpu.memory_space<vmem>>) attributes {dimension_semantics = [#tpu.dimension_semantics<parallel>], iteration_bounds = array<i64: 3>, scalar_prefetch = 1 : i64, scratch_operands = 0 : i64, tpu.core_type = #tpu.core_type<tc>, window_params = [{transform_indices = @transform_0, window_bounds = array<i64: 16, 1>}, {transform_indices = @transform_1, window_bounds = array<i64: 16, 32>}, {pipeline_mode = #tpu.pipeline_mode<synchronous>, transform_indices = @transform_2, window_bounds = array<i64: 2, 32, 128>}, {pipeline_mode = #tpu.pipeline_mode<synchronous>, transform_indices = @transform_3, window_bounds = array<i64: 2, 128, 32>}, {pipeline_mode = #tpu.pipeline_mode<synchronous>, transform_indices = @transform_4, window_bounds = array<i64: 2, 1, 128>}, {pipeline_mode = #tpu.pipeline_mode<synchronous>, transform_indices = @transform_5, window_bounds = array<i64: 2, 1, 128>}, {pipeline_mode = #tpu.pipeline_mode<synchronous>, transform_indices = @transform_6, window_bounds = array<i64: 2, 1, 1>}, {transform_indices = @transform_7, window_bounds = array<i64: 16, 1>}, {transform_indices = @transform_8, window_bounds = array<i64: 16, 32>}]} {
    %c0 = arith.constant 0 : index
    %c0_0 = arith.constant 0 : index
    %0 = vector.load %arg3[%c0, %c0_0] : memref<16x32xbf16, #tpu.memory_space<vmem>>, vector<16x32xbf16>
    %c0_1 = arith.constant 0 : index
    %c0_2 = arith.constant 0 : index
    %1 = vector.load %arg2[%c0_1, %c0_2] : memref<16x1xi32, #tpu.memory_space<vmem>>, vector<16x1xi32>
    %cst = arith.constant 0.000000e+00 : f32
    %2 = vector.broadcast %cst : f32 to vector<16x1xf32>
    %cst_3 = arith.constant 0.000000e+00 : f32
    %3 = vector.broadcast %cst_3 : f32 to vector<16x32xf32>
    %c0_4 = arith.constant 0 : index
    %c0_5 = arith.constant 0 : index
    %c0_6 = arith.constant 0 : index
    %4 = vector.load %arg4[%c0_4, %c0_5, %c0_6] : memref<2x32x128xbf16, #tpu.memory_space<vmem>>, vector<1x32x128xbf16>
    %5 = vector.shape_cast %4 : vector<1x32x128xbf16> to vector<32x128xbf16>
    %cst_7 = arith.constant dense<0.000000e+00> : vector<16x128xf32>
    %6 = tpu.matmul %0, %5, %cst_7 {dimension_numbers = #tpu.dot_dimension_numbers<[1], [0], [0], [1], [0, 0, 1, 1], [], []>} : vector<16x32xbf16>, vector<32x128xbf16>, vector<16x128xf32> -> vector<16x128xf32>
    %c0_8 = arith.constant 0 : index
    %c0_9 = arith.constant 0 : index
    %c0_10 = arith.constant 0 : index
    %7 = vector.load %arg6[%c0_8, %c0_9, %c0_10] : memref<2x1x128xf32, #tpu.memory_space<vmem>>, vector<1x1x128xf32>
    %8 = vector.shape_cast %7 : vector<1x1x128xf32> to vector<1x128xf32>
    %9 = vector.broadcast %8 : vector<1x128xf32> to vector<16x128xf32>
    %10 = arith.addf %6, %9 : vector<16x128xf32>
    %cst_11 = arith.constant 0.000000e+00 : f32
    %11 = vector.broadcast %cst_11 : f32 to vector<16x128xf32>
    %12 = arith.subf %11, %10 : vector<16x128xf32>
    %13 = math.exp %12 : vector<16x128xf32>
    %cst_12 = arith.constant 1.000000e+00 : f32
    %14 = vector.broadcast %cst_12 : f32 to vector<16x128xf32>
    %15 = arith.addf %14, %13 : vector<16x128xf32>
    %cst_13 = arith.constant 1.000000e+00 : f32
    %16 = vector.broadcast %cst_13 : f32 to vector<16x128xf32>
    %17 = arith.divf %16, %15 : vector<16x128xf32>
    %18 = arith.mulf %10, %17 : vector<16x128xf32>
    %c0_14 = arith.constant 0 : index
    %c0_15 = arith.constant 0 : index
    %c0_16 = arith.constant 0 : index
    %19 = vector.load %arg7[%c0_14, %c0_15, %c0_16] : memref<2x1x128xf32, #tpu.memory_space<vmem>>, vector<1x1x128xf32>
    %20 = vector.shape_cast %19 : vector<1x1x128xf32> to vector<1x128xf32>
    %21 = vector.broadcast %20 : vector<1x128xf32> to vector<16x128xf32>
    %22 = arith.mulf %18, %21 : vector<16x128xf32>
    %cst_17 = arith.constant dense<0.000000e+00> : vector<16xf32>
    %23 = vector.multi_reduction <add>, %22, %cst_17 [1] : vector<16x128xf32> to vector<16xf32>
    %24 = vector.shape_cast %23 : vector<16xf32> to vector<16x1xf32>
    %c0_18 = arith.constant 0 : index
    %c0_19 = arith.constant 0 : index
    %c0_20 = arith.constant 0 : index
    %25 = vector.load %arg8[%c0_18, %c0_19, %c0_20] : memref<2x1x1xf32, #tpu.memory_space<vmem>>, vector<1x1x1xf32>
    %26 = vector.shape_cast %25 : vector<1x1x1xf32> to vector<1x1xf32>
    %27 = vector.broadcast %26 : vector<1x1xf32> to vector<16x1xf32>
    %28 = arith.addf %24, %27 : vector<16x1xf32>
    %cst_21 = arith.constant 1.000000e+00 : f32
    %29 = vector.broadcast %cst_21 : f32 to vector<16x128xf32>
    %30 = arith.subf %29, %17 : vector<16x128xf32>
    %31 = arith.mulf %18, %30 : vector<16x128xf32>
    %32 = arith.addf %17, %31 : vector<16x128xf32>
    %33 = vector.broadcast %20 : vector<1x128xf32> to vector<16x128xf32>
    %34 = arith.mulf %32, %33 : vector<16x128xf32>
    %35 = arith.truncf %34 : vector<16x128xf32> to vector<16x128xbf16>
    %c0_22 = arith.constant 0 : index
    %c0_23 = arith.constant 0 : index
    %c0_24 = arith.constant 0 : index
    %36 = vector.load %arg5[%c0_22, %c0_23, %c0_24] : memref<2x128x32xbf16, #tpu.memory_space<vmem>>, vector<1x128x32xbf16>
    %37 = vector.shape_cast %36 : vector<1x128x32xbf16> to vector<128x32xbf16>
    %cst_25 = arith.constant dense<0.000000e+00> : vector<16x32xf32>
    %38 = tpu.matmul %35, %37, %cst_25 {dimension_numbers = #tpu.dot_dimension_numbers<[1], [0], [0], [1], [0, 0, 1, 1], [], []>} : vector<16x128xbf16>, vector<128x32xbf16>, vector<16x32xf32> -> vector<16x32xf32>
    %c0_26 = arith.constant 0 : index
    %39 = memref.load %arg1[%c0_26] : memref<2xi32, #tpu.memory_space<smem>>
    %40 = vector.broadcast %39 : i32 to vector<16x1xi32>
    %41 = arith.cmpi eq, %1, %40 : vector<16x1xi32>
    %42 = arith.extui %41 : vector<16x1xi1> to vector<16x1xi32>
    %43 = arith.sitofp %42 : vector<16x1xi32> to vector<16x1xf32>
    %44 = arith.mulf %43, %28 : vector<16x1xf32>
    %45 = arith.addf %2, %44 : vector<16x1xf32>
    %46 = vector.broadcast %43 : vector<16x1xf32> to vector<16x32xf32>
    %47 = arith.mulf %46, %38 : vector<16x32xf32>
    %48 = arith.addf %3, %47 : vector<16x32xf32>
    %c1 = arith.constant 1 : index
    %c0_27 = arith.constant 0 : index
    %c0_28 = arith.constant 0 : index
    %49 = vector.load %arg4[%c1, %c0_27, %c0_28] : memref<2x32x128xbf16, #tpu.memory_space<vmem>>, vector<1x32x128xbf16>
    %50 = vector.shape_cast %49 : vector<1x32x128xbf16> to vector<32x128xbf16>
    %cst_29 = arith.constant dense<0.000000e+00> : vector<16x128xf32>
    %51 = tpu.matmul %0, %50, %cst_29 {dimension_numbers = #tpu.dot_dimension_numbers<[1], [0], [0], [1], [0, 0, 1, 1], [], []>} : vector<16x32xbf16>, vector<32x128xbf16>, vector<16x128xf32> -> vector<16x128xf32>
    %c1_30 = arith.constant 1 : index
    %c0_31 = arith.constant 0 : index
    %c0_32 = arith.constant 0 : index
    %52 = vector.load %arg6[%c1_30, %c0_31, %c0_32] : memref<2x1x128xf32, #tpu.memory_space<vmem>>, vector<1x1x128xf32>
    %53 = vector.shape_cast %52 : vector<1x1x128xf32> to vector<1x128xf32>
    %54 = vector.broadcast %53 : vector<1x128xf32> to vector<16x128xf32>
    %55 = arith.addf %51, %54 : vector<16x128xf32>
    %cst_33 = arith.constant 0.000000e+00 : f32
    %56 = vector.broadcast %cst_33 : f32 to vector<16x128xf32>
    %57 = arith.subf %56, %55 : vector<16x128xf32>
    %58 = math.exp %57 : vector<16x128xf32>
    %cst_34 = arith.constant 1.000000e+00 : f32
    %59 = vector.broadcast %cst_34 : f32 to vector<16x128xf32>
    %60 = arith.addf %59, %58 : vector<16x128xf32>
    %cst_35 = arith.constant 1.000000e+00 : f32
    %61 = vector.broadcast %cst_35 : f32 to vector<16x128xf32>
    %62 = arith.divf %61, %60 : vector<16x128xf32>
    %63 = arith.mulf %55, %62 : vector<16x128xf32>
    %c1_36 = arith.constant 1 : index
    %c0_37 = arith.constant 0 : index
    %c0_38 = arith.constant 0 : index
    %64 = vector.load %arg7[%c1_36, %c0_37, %c0_38] : memref<2x1x128xf32, #tpu.memory_space<vmem>>, vector<1x1x128xf32>
    %65 = vector.shape_cast %64 : vector<1x1x128xf32> to vector<1x128xf32>
    %66 = vector.broadcast %65 : vector<1x128xf32> to vector<16x128xf32>
    %67 = arith.mulf %63, %66 : vector<16x128xf32>
    %cst_39 = arith.constant dense<0.000000e+00> : vector<16xf32>
    %68 = vector.multi_reduction <add>, %67, %cst_39 [1] : vector<16x128xf32> to vector<16xf32>
    %69 = vector.shape_cast %68 : vector<16xf32> to vector<16x1xf32>
    %c1_40 = arith.constant 1 : index
    %c0_41 = arith.constant 0 : index
    %c0_42 = arith.constant 0 : index
    %70 = vector.load %arg8[%c1_40, %c0_41, %c0_42] : memref<2x1x1xf32, #tpu.memory_space<vmem>>, vector<1x1x1xf32>
    %71 = vector.shape_cast %70 : vector<1x1x1xf32> to vector<1x1xf32>
    %72 = vector.broadcast %71 : vector<1x1xf32> to vector<16x1xf32>
    %73 = arith.addf %69, %72 : vector<16x1xf32>
    %cst_43 = arith.constant 1.000000e+00 : f32
    %74 = vector.broadcast %cst_43 : f32 to vector<16x128xf32>
    %75 = arith.subf %74, %62 : vector<16x128xf32>
    %76 = arith.mulf %63, %75 : vector<16x128xf32>
    %77 = arith.addf %62, %76 : vector<16x128xf32>
    %78 = vector.broadcast %65 : vector<1x128xf32> to vector<16x128xf32>
    %79 = arith.mulf %77, %78 : vector<16x128xf32>
    %80 = arith.truncf %79 : vector<16x128xf32> to vector<16x128xbf16>
    %c1_44 = arith.constant 1 : index
    %c0_45 = arith.constant 0 : index
    %c0_46 = arith.constant 0 : index
    %81 = vector.load %arg5[%c1_44, %c0_45, %c0_46] : memref<2x128x32xbf16, #tpu.memory_space<vmem>>, vector<1x128x32xbf16>
    %82 = vector.shape_cast %81 : vector<1x128x32xbf16> to vector<128x32xbf16>
    %cst_47 = arith.constant dense<0.000000e+00> : vector<16x32xf32>
    %83 = tpu.matmul %80, %82, %cst_47 {dimension_numbers = #tpu.dot_dimension_numbers<[1], [0], [0], [1], [0, 0, 1, 1], [], []>} : vector<16x128xbf16>, vector<128x32xbf16>, vector<16x32xf32> -> vector<16x32xf32>
    %c1_48 = arith.constant 1 : index
    %84 = memref.load %arg1[%c1_48] : memref<2xi32, #tpu.memory_space<smem>>
    %85 = vector.broadcast %84 : i32 to vector<16x1xi32>
    %86 = arith.cmpi eq, %1, %85 : vector<16x1xi32>
    %87 = arith.extui %86 : vector<16x1xi1> to vector<16x1xi32>
    %88 = arith.sitofp %87 : vector<16x1xi32> to vector<16x1xf32>
    %89 = arith.mulf %88, %73 : vector<16x1xf32>
    %90 = arith.addf %45, %89 : vector<16x1xf32>
    %91 = vector.broadcast %88 : vector<16x1xf32> to vector<16x32xf32>
    %92 = arith.mulf %91, %83 : vector<16x32xf32>
    %93 = arith.addf %48, %92 : vector<16x32xf32>
    %c0_49 = arith.constant 0 : index
    %c0_50 = arith.constant 0 : index
    %94 = vector.load %arg9[%c0_49, %c0_50] : memref<16x1xf32, #tpu.memory_space<vmem>>, vector<16x1xf32>
    tpu.vector_store %arg9[%c0_49, %c0_50], %90 {strides = array<i32>} : memref<16x1xf32, #tpu.memory_space<vmem>>, vector<16x1xf32>,
    %95 = arith.truncf %93 : vector<16x32xf32> to vector<16x32xbf16>
    %c0_51 = arith.constant 0 : index
    %c0_52 = arith.constant 0 : index
    %96 = vector.load %arg10[%c0_51, %c0_52] : memref<16x32xbf16, #tpu.memory_space<vmem>>, vector<16x32xbf16>
    tpu.vector_store %arg10[%c0_51, %c0_52], %95 {strides = array<i32>} : memref<16x32xbf16, #tpu.memory_space<vmem>>, vector<16x32xbf16>,
    return
  }
  func.func @transform_0(%arg0: i32, %arg1: memref<2xi32, #tpu.memory_space<smem>>) -> (i32, i32) {
    %c0_i32 = arith.constant 0 : i32
    %c0_i32_0 = arith.constant 0 : i32
    return %arg0, %c0_i32 : i32, i32
  }
  func.func @transform_1(%arg0: i32, %arg1: memref<2xi32, #tpu.memory_space<smem>>) -> (i32, i32) {
    %c0_i32 = arith.constant 0 : i32
    %c0_i32_0 = arith.constant 0 : i32
    return %arg0, %c0_i32 : i32, i32
  }
  func.func @transform_2(%arg0: i32, %arg1: memref<2xi32, #tpu.memory_space<smem>>) -> (i32, i32, i32) {
    %c0_i32 = arith.constant 0 : i32
    %c0_i32_0 = arith.constant 0 : i32
    %c0_i32_1 = arith.constant 0 : i32
    %c0_i32_2 = arith.constant 0 : i32
    return %c0_i32, %c0_i32_0, %c0_i32_1 : i32, i32, i32
  }
  func.func @transform_3(%arg0: i32, %arg1: memref<2xi32, #tpu.memory_space<smem>>) -> (i32, i32, i32) {
    %c0_i32 = arith.constant 0 : i32
    %c0_i32_0 = arith.constant 0 : i32
    %c0_i32_1 = arith.constant 0 : i32
    %c0_i32_2 = arith.constant 0 : i32
    return %c0_i32, %c0_i32_0, %c0_i32_1 : i32, i32, i32
  }
  func.func @transform_4(%arg0: i32, %arg1: memref<2xi32, #tpu.memory_space<smem>>) -> (i32, i32, i32) {
    %c0_i32 = arith.constant 0 : i32
    %c0_i32_0 = arith.constant 0 : i32
    %c0_i32_1 = arith.constant 0 : i32
    %c0_i32_2 = arith.constant 0 : i32
    return %c0_i32, %c0_i32_0, %c0_i32_1 : i32, i32, i32
  }
  func.func @transform_5(%arg0: i32, %arg1: memref<2xi32, #tpu.memory_space<smem>>) -> (i32, i32, i32) {
    %c0_i32 = arith.constant 0 : i32
    %c0_i32_0 = arith.constant 0 : i32
    %c0_i32_1 = arith.constant 0 : i32
    %c0_i32_2 = arith.constant 0 : i32
    return %c0_i32, %c0_i32_0, %c0_i32_1 : i32, i32, i32
  }
  func.func @transform_6(%arg0: i32, %arg1: memref<2xi32, #tpu.memory_space<smem>>) -> (i32, i32, i32) {
    %c0_i32 = arith.constant 0 : i32
    %c0_i32_0 = arith.constant 0 : i32
    %c0_i32_1 = arith.constant 0 : i32
    %c0_i32_2 = arith.constant 0 : i32
    return %c0_i32, %c0_i32_0, %c0_i32_1 : i32, i32, i32
  }
  func.func @transform_7(%arg0: i32, %arg1: memref<2xi32, #tpu.memory_space<smem>>) -> (i32, i32) {
    %c0_i32 = arith.constant 0 : i32
    %c0_i32_0 = arith.constant 0 : i32
    return %arg0, %c0_i32 : i32, i32
  }
  func.func @transform_8(%arg0: i32, %arg1: memref<2xi32, #tpu.memory_space<smem>>) -> (i32, i32) {
    %c0_i32 = arith.constant 0 : i32
    %c0_i32_0 = arith.constant 0 : i32
    return %arg0, %c0_i32 : i32, i32
  }
}

</mosaic_0001>

<llo_original>
// kernel: tpu_custom_call.1
$region0: #{tpu_custom_call.1}
  #allocation0 [shape = 'u32[]', space=smem, size = 0x4, offset = 0x4, fixed_abs, tag = 'smem constant byte address 0x4 - core index']
  #allocation1 [shape = 'u32[144,128]{1,0:T(1,128)}', space=vmem, size = 0x12000, scoped, tag = 'internal scratch']
  #allocation2 [shape = 's32[1]{0}', space=sflag, size = 0x4, scoped, tag = 'scoped memory for tpu_custom_call.1']
  #allocation3 [shape = 'u8[512]{0}', space=smem, size = 0x200, scoped, tag = 'prefetched SMEM operand 0']
  %s0 = inlined_call_operand.vmem [shape: s32[2], index: 0, kind: input, shape index: {}]
  %s1 = inlined_call_operand.vmem [shape: s32[48,1], index: 1, kind: input, shape index: {}]
  %s2 = inlined_call_operand.vmem [shape: bf16[48,32], index: 2, kind: input, shape index: {}]
  %s3 = inlined_call_operand.vmem [shape: bf16[2,32,128], index: 3, kind: input, shape index: {}]
  %s4 = inlined_call_operand.vmem [shape: bf16[2,128,32], index: 4, kind: input, shape index: {}]
  %s5 = inlined_call_operand.vmem [shape: f32[2,1,128], index: 5, kind: input, shape index: {}]
  %s6 = inlined_call_operand.vmem [shape: f32[2,1,128], index: 6, kind: input, shape index: {}]
  %s7 = inlined_call_operand.vmem [shape: f32[2,1,1], index: 7, kind: input, shape index: {}]
  %s8 = inlined_call_operand.vmem [shape: f32[48,1], index: 8, kind: output, shape index: {0}]
  %s9 = inlined_call_operand.vmem [shape: bf16[48,32], index: 9, kind: output, shape index: {1}]
  %10 = xla_tuple %s8, %s9
  %s11 = sld [smem:[#allocation0]]
  $region69: #{tpu_custom_call.1} parent=0
    _
  %s13 = ssub.s32 1, %s11
  %s14 = scalar_select 0, %s13, %s11
  %s15 = sshll.u32 %s0, 4
  %s16 = int_to_ptr.vmem [resolvable:$true] %s15
  %18 = dma.vmem_to_smem %s16, 16, [#allocation3], [#allocation2]
  %19 = dma.done [#allocation2], 16
  %20 = sfence
  loop: start=0, step=1, limit=5
  $region2: #{tpu_custom_call.1} parent=0 // loop_pre_header
    _
  $region3: #{tpu_custom_call.1} parent=0 // loop_header
    %s22 = sphi 0, %s26
    %p23 = scmp.ge.s32.totalorder %s22, 5
    %s32 = sphi 0, %s34
    %s35 = sphi 0, %s32
    %s36 = sphi 0, %s35
    %s52 = sphi 0, %s36
    %s58 = sphi 0, %s60
    %s61 = sphi 0, %s58
    %s62 = sphi 0, %s61
    %s78 = sphi 0, %s62
    %s82 = sphi 0, %s82
    %s84 = sphi 0, %s82
    %s85 = sphi 0, %s84
    %s99 = sphi 0, %s85
    %s103 = sphi 0, %s103
    %s105 = sphi 0, %s103
    %s106 = sphi 0, %s105
    %s120 = sphi 0, %s106
    %s124 = sphi 0, %s124
    %s126 = sphi 0, %s124
    %s127 = sphi 0, %s126
    %s141 = sphi 0, %s127
    %s145 = sphi 0, %s145
    %s147 = sphi 0, %s145
    %s148 = sphi 0, %s147
    %s162 = sphi 0, %s148
    %s166 = sphi 0, %s166
    %s168 = sphi 0, %s166
    %s169 = sphi 0, %s168
    %s183 = sphi 0, %s169
    %s189 = sphi 0, %s191
    %s192 = sphi 0, %s189
    %s193 = sphi 0, %s192
    %s209 = sphi 0, %s193
    %s215 = sphi 0, %s217
    %s218 = sphi 0, %s215
    %s219 = sphi 0, %s218
    %s235 = sphi 0, %s219
  $region4: #{tpu_custom_call.1} parent=0 // loop_header_branch
    %25 = sbr.rel (%p23) target = $region8
  $region5: #{tpu_custom_call.1} parent=0 // loop_body
    %s27 = ssub.s32 %s22, 1
    %s28 = ssub.s32 %s22, 2
    %s29 = sadd.s32 %s22, 1
    %s30 = ssub.s32 %s22, %s29
    %p31 = scmp.eq.s32.totalorder %s30, 0
    %s33 = sadd.s32 %s32, 1
    %s34 = scalar_select %p31, %s32, %s33
    %p37 = pneg %p31
    %p38 = scmp.eq.s32.totalorder %s22, 2
    %p39 = por %p37, %p38
    %p40 = scmp.ne.s32.totalorder %s32, %s35
    %p41 = scmp.eq.s32.totalorder %s22, 0
    %p42 = por %p40, %p41
    %p43 = scmp.ne.s32.totalorder %s32, %s35
    %p44 = scmp.eq.s32.totalorder %s27, 2
    %p45 = por %p43, %p44
    %p46 = scmp.ne.s32.totalorder %s35, %s36
    %p47 = scmp.eq.s32.totalorder %s27, 0
    %p48 = por %p46, %p47
    %p49 = scmp.ne.s32.totalorder %s35, %s36
    %p50 = scmp.eq.s32.totalorder %s28, 2
    %p51 = por %p49, %p50
    %p53 = scmp.ne.s32.totalorder %s36, %s52
    %p54 = scmp.eq.s32.totalorder %s28, 0
    %p55 = por %p53, %p54
    %s56 = ssub.s32 %s22, %s29
    %p57 = scmp.eq.s32.totalorder %s56, 0
    %s59 = sadd.s32 %s58, 1
    %s60 = scalar_select %p57, %s58, %s59
    %p63 = pneg %p57
    %p64 = scmp.eq.s32.totalorder %s22, 2
    %p65 = por %p63, %p64
    %p66 = scmp.ne.s32.totalorder %s58, %s61
    %p67 = scmp.eq.s32.totalorder %s22, 0
    %p68 = por %p66, %p67
    %p69 = scmp.ne.s32.totalorder %s58, %s61
    %p70 = scmp.eq.s32.totalorder %s27, 2
    %p71 = por %p69, %p70
    %p72 = scmp.ne.s32.totalorder %s61, %s62
    %p73 = scmp.eq.s32.totalorder %s27, 0
    %p74 = por %p72, %p73
    %p75 = scmp.ne.s32.totalorder %s61, %s62
    %p76 = scmp.eq.s32.totalorder %s28, 2
    %p77 = por %p75, %p76
    %p79 = scmp.ne.s32.totalorder %s62, %s78
    %p80 = scmp.eq.s32.totalorder %s28, 0
    %p81 = por %p79, %p80
    %s83 = sadd.s32 %s82, 1
    %p86 = scmp.eq.s32.totalorder %s22, 2
    %p87 = scmp.ne.s32.totalorder %s82, %s84
    %p88 = scmp.eq.s32.totalorder %s22, 0
    %p89 = por %p87, %p88
    %p90 = scmp.ne.s32.totalorder %s82, %s84
    %p91 = scmp.eq.s32.totalorder %s27, 2
    %p92 = por %p90, %p91
    %p93 = scmp.ne.s32.totalorder %s84, %s85
    %p94 = scmp.eq.s32.totalorder %s27, 0
    %p95 = por %p93, %p94
    %p96 = scmp.ne.s32.totalorder %s84, %s85
    %p97 = scmp.eq.s32.totalorder %s28, 2
    %p98 = por %p96, %p97
    %p100 = scmp.ne.s32.totalorder %s85, %s99
    %p101 = scmp.eq.s32.totalorder %s28, 0
    %p102 = por %p100, %p101
    %s104 = sadd.s32 %s103, 1
    %p107 = scmp.eq.s32.totalorder %s22, 2
    %p108 = scmp.ne.s32.totalorder %s103, %s105
    %p109 = scmp.eq.s32.totalorder %s22, 0
    %p110 = por %p108, %p109
    %p111 = scmp.ne.s32.totalorder %s103, %s105
    %p112 = scmp.eq.s32.totalorder %s27, 2
    %p113 = por %p111, %p112
    %p114 = scmp.ne.s32.totalorder %s105, %s106
    %p115 = scmp.eq.s32.totalorder %s27, 0
    %p116 = por %p114, %p115
    %p117 = scmp.ne.s32.totalorder %s105, %s106
    %p118 = scmp.eq.s32.totalorder %s28, 2
    %p119 = por %p117, %p118
    %p121 = scmp.ne.s32.totalorder %s106, %s120
    %p122 = scmp.eq.s32.totalorder %s28, 0
    %p123 = por %p121, %p122
    %s125 = sadd.s32 %s124, 1
    %p128 = scmp.eq.s32.totalorder %s22, 2
    %p129 = scmp.ne.s32.totalorder %s124, %s126
    %p130 = scmp.eq.s32.totalorder %s22, 0
    %p131 = por %p129, %p130
    %p132 = scmp.ne.s32.totalorder %s124, %s126
    %p133 = scmp.eq.s32.totalorder %s27, 2
    %p134 = por %p132, %p133
    %p135 = scmp.ne.s32.totalorder %s126, %s127
    %p136 = scmp.eq.s32.totalorder %s27, 0
    %p137 = por %p135, %p136
    %p138 = scmp.ne.s32.totalorder %s126, %s127
    %p139 = scmp.eq.s32.totalorder %s28, 2
    %p140 = por %p138, %p139
    %p142 = scmp.ne.s32.totalorder %s127, %s141
    %p143 = scmp.eq.s32.totalorder %s28, 0
    %p144 = por %p142, %p143
    %s146 = sadd.s32 %s145, 1
    %p149 = scmp.eq.s32.totalorder %s22, 2
    %p150 = scmp.ne.s32.totalorder %s145, %s147
    %p151 = scmp.eq.s32.totalorder %s22, 0
    %p152 = por %p150, %p151
    %p153 = scmp.ne.s32.totalorder %s145, %s147
    %p154 = scmp.eq.s32.totalorder %s27, 2
    %p155 = por %p153, %p154
    %p156 = scmp.ne.s32.totalorder %s147, %s148
    %p157 = scmp.eq.s32.totalorder %s27, 0
    %p158 = por %p156, %p157
    %p159 = scmp.ne.s32.totalorder %s147, %s148
    %p160 = scmp.eq.s32.totalorder %s28, 2
    %p161 = por %p159, %p160
    %p163 = scmp.ne.s32.totalorder %s148, %s162
    %p164 = scmp.eq.s32.totalorder %s28, 0
    %p165 = por %p163, %p164
    %s167 = sadd.s32 %s166, 1
    %p170 = scmp.eq.s32.totalorder %s22, 2
    %p171 = scmp.ne.s32.totalorder %s166, %s168
    %p172 = scmp.eq.s32.totalorder %s22, 0
    %p173 = por %p171, %p172
    %p174 = scmp.ne.s32.totalorder %s166, %s168
    %p175 = scmp.eq.s32.totalorder %s27, 2
    %p176 = por %p174, %p175
    %p177 = scmp.ne.s32.totalorder %s168, %s169
    %p178 = scmp.eq.s32.totalorder %s27, 0
    %p179 = por %p177, %p178
    %p180 = scmp.ne.s32.totalorder %s168, %s169
    %p181 = scmp.eq.s32.totalorder %s28, 2
    %p182 = por %p180, %p181
    %p184 = scmp.ne.s32.totalorder %s169, %s183
    %p185 = scmp.eq.s32.totalorder %s28, 0
    %p186 = por %p184, %p185
    %s187 = ssub.s32 %s22, %s29
    %p188 = scmp.eq.s32.totalorder %s187, 0
    %s190 = sadd.s32 %s189, 1
    %s191 = scalar_select %p188, %s189, %s190
    %p194 = pneg %p188
    %p195 = scmp.eq.s32.totalorder %s22, 2
    %p196 = por %p194, %p195
    %p197 = scmp.ne.s32.totalorder %s189, %s192
    %p198 = scmp.eq.s32.totalorder %s22, 0
    %p199 = por %p197, %p198
    %p200 = scmp.ne.s32.totalorder %s189, %s192
    %p201 = scmp.eq.s32.totalorder %s27, 2
    %p202 = por %p200, %p201
    %p203 = scmp.ne.s32.totalorder %s192, %s193
    %p204 = scmp.eq.s32.totalorder %s27, 0
    %p205 = por %p203, %p204
    %p206 = scmp.ne.s32.totalorder %s192, %s193
    %p207 = scmp.eq.s32.totalorder %s28, 2
    %p208 = por %p206, %p207
    %p210 = scmp.ne.s32.totalorder %s193, %s209
    %p211 = scmp.eq.s32.totalorder %s28, 0
    %p212 = por %p210, %p211
    %s213 = ssub.s32 %s22, %s29
    %p214 = scmp.eq.s32.totalorder %s213, 0
    %s216 = sadd.s32 %s215, 1
    %s217 = scalar_select %p214, %s215, %s216
    %p220 = pneg %p214
    %p221 = scmp.eq.s32.totalorder %s22, 2
    %p222 = por %p220, %p221
    %p223 = scmp.ne.s32.totalorder %s215, %s218
    %p224 = scmp.eq.s32.totalorder %s22, 0
    %p225 = por %p223, %p224
    %p226 = scmp.ne.s32.totalorder %s215, %s218
    %p227 = scmp.eq.s32.totalorder %s27, 2
    %p228 = por %p226, %p227
    %p229 = scmp.ne.s32.totalorder %s218, %s219
    %p230 = scmp.eq.s32.totalorder %s27, 0
    %p231 = por %p229, %p230
    %p232 = scmp.ne.s32.totalorder %s218, %s219
    %p233 = scmp.eq.s32.totalorder %s28, 2
    %p234 = por %p232, %p233
    %p236 = scmp.ne.s32.totalorder %s219, %s235
    %p237 = scmp.eq.s32.totalorder %s28, 0
    %p238 = por %p236, %p237
    %p239 = scmp.le.s32.totalorder 1, %s22
    %p240 = scmp.lt.s32.totalorder %s22, 4
    %p241 = pnand %p239, %p240
    %p242 = pneg %p241
    // Predicated region
    $region9: #{tpu_custom_call.1} parent=5 // pred_check
      _
    $region10: #{tpu_custom_call.1} parent=5 // pred_check_branch
      %244 = sbr.rel (%p241) target = $region12
    $region11: #{tpu_custom_call.1} parent=5 // pred_region
      %s245 = ssub.s32 %s22, 1
      // Predicated region
      $region13: #{tpu_custom_call.1} parent=11 // pred_check
        %p246 = pneg %p95
      $region14: #{tpu_custom_call.1} parent=11 // pred_check_branch
        %248 = sbr.rel (%p246) target = $region16
      $region15: #{tpu_custom_call.1} parent=11 // pred_region
        _
      $region16: #{tpu_custom_call.1} parent=11 // pred_fallthru
        _
      // Predicated region
      $region17: #{tpu_custom_call.1} parent=11 // pred_check
        %p249 = pneg %p116
      $region18: #{tpu_custom_call.1} parent=11 // pred_check_branch
        %251 = sbr.rel (%p249) target = $region20
      $region19: #{tpu_custom_call.1} parent=11 // pred_region
        _
      $region20: #{tpu_custom_call.1} parent=11 // pred_fallthru
        _
      // Predicated region
      $region21: #{tpu_custom_call.1} parent=11 // pred_check
        %p252 = pneg %p137
      $region22: #{tpu_custom_call.1} parent=11 // pred_check_branch
        %254 = sbr.rel (%p252) target = $region24
      $region23: #{tpu_custom_call.1} parent=11 // pred_region
        _
      $region24: #{tpu_custom_call.1} parent=11 // pred_fallthru
        _
      // Predicated region
      $region25: #{tpu_custom_call.1} parent=11 // pred_check
        %p255 = pneg %p158
      $region26: #{tpu_custom_call.1} parent=11 // pred_check_branch
        %257 = sbr.rel (%p255) target = $region28
      $region27: #{tpu_custom_call.1} parent=11 // pred_region
        _
      $region28: #{tpu_custom_call.1} parent=11 // pred_fallthru
        _
      // Predicated region
      $region29: #{tpu_custom_call.1} parent=11 // pred_check
        %p258 = pneg %p179
      $region30: #{tpu_custom_call.1} parent=11 // pred_check_branch
        %260 = sbr.rel (%p258) target = $region32
      $region31: #{tpu_custom_call.1} parent=11 // pred_region
        _
      $region32: #{tpu_custom_call.1} parent=11 // pred_fallthru
        _
    $region12: #{tpu_custom_call.1} parent=5 // pred_fallthru
      _
    %p261 = scmp.lt.s32.totalorder %s22, 3
    // Predicated region
    $region33: #{tpu_custom_call.1} parent=5 // pred_check
      %p262 = pneg %p261
    $region34: #{tpu_custom_call.1} parent=5 // pred_check_branch
      %264 = sbr.rel (%p262) target = $region36
    $region35: #{tpu_custom_call.1} parent=5 // pred_region
      // Predicated region
      $region37: #{tpu_custom_call.1} parent=35 // pred_check
        %p265 = pneg %p42
      $region38: #{tpu_custom_call.1} parent=35 // pred_check_branch
        %267 = sbr.rel (%p265) target = $region40
      $region39: #{tpu_custom_call.1} parent=35 // pred_region
        %s268 = smul.u32 2, %s22
        %p269 = scmp.lt.s32.totalorder %s268, 5
        %s270 = scalar_select %p269, %s268, 5
        %s271 = smul.addr %s270, 8
        %s272 = scalar_lea.vmem %s1, %s271
        %s273 = smul.u32 2, %s22
      $region40: #{tpu_custom_call.1} parent=35 // pred_fallthru
        _
      // Predicated region
      $region41: #{tpu_custom_call.1} parent=35 // pred_check
        %p274 = pneg %p68
      $region42: #{tpu_custom_call.1} parent=35 // pred_check_branch
        %276 = sbr.rel (%p274) target = $region44
      $region43: #{tpu_custom_call.1} parent=35 // pred_region
        %s277 = smul.u32 2, %s22
        %p278 = scmp.lt.s32.totalorder %s277, 5
        %s279 = scalar_select %p278, %s277, 5
        %s280 = smul.addr %s279, 4
        %s281 = scalar_lea.vmem %s2, %s280
        %s282 = smul.u32 2, %s22
      $region44: #{tpu_custom_call.1} parent=35 // pred_fallthru
        _
    $region36: #{tpu_custom_call.1} parent=5 // pred_fallthru
      _
    %p283 = scmp.le.s32.totalorder 1, %s22
    %p284 = scmp.lt.s32.totalorder %s22, 4
    %p285 = pnand %p283, %p284
    %p286 = pneg %p285
    // Predicated region
    $region45: #{tpu_custom_call.1} parent=5 // pred_check
      _
    $region46: #{tpu_custom_call.1} parent=5 // pred_check_branch
      %288 = sbr.rel (%p285) target = $region48
    $region47: #{tpu_custom_call.1} parent=5 // pred_region
      %s289 = ssub.s32 %s22, 1
      %s290 = smul.u32 2, %s27
      %p291 = scmp.lt.s32.totalorder %s290, 5
      %s292 = scalar_select %p291, %s290, 5
      %s293 = smul.addr %s292, 8
      %s294 = scalar_lea.vmem %s1, %s293
      %p295 = pneg %p48
      %p296 = pneg %p45
      %s297 = smul.u32 2, %s27
      %p298 = scmp.lt.s32.totalorder %s297, 5
      %s299 = scalar_select %p298, %s297, 5
      %s300 = smul.addr %s299, 4
      %s301 = scalar_lea.vmem %s2, %s300
      %p302 = pneg %p74
      %p303 = pneg %p71
      %p304 = pneg %p95
      %p305 = pneg %p92
      %p306 = pneg %p116
      %p307 = pneg %p113
      %p308 = pneg %p137
      %p309 = pneg %p134
      %p310 = pneg %p158
      %p311 = pneg %p155
      %p312 = pneg %p179
      %p313 = pneg %p176
      %p314 = pneg %p205
      %p315 = pneg %p202
      %s316 = smul.u32 2, %s27
      %p317 = scmp.lt.s32.totalorder %s316, 5
      %s318 = scalar_select %p317, %s316, 5
      %s319 = smul.addr %s318, 8
      %s320 = scalar_lea.vmem %s8, %s319
      %p321 = pneg %p231
      %p322 = pneg %p228
      %s323 = smul.u32 2, %s27
      %p324 = scmp.lt.s32.totalorder %s323, 5
      %s325 = scalar_select %p324, %s323, 5
      %s326 = smul.addr %s325, 4
      %s327 = scalar_lea.vmem %s9, %s326
      %s328 = smul.u32 2, %s27
      %p329 = scmp.lt.s32.totalorder %s328, 5
      %s330 = scalar_select %p329, %s328, 5
      %s331 = smul.addr %s330, 8
      %s332 = scalar_lea.vmem %s1, %s331
      %s333 = smul.u32 2, %s27
      %s334 = smul.u32 2, %s27
      %p335 = scmp.lt.s32.totalorder %s334, 5
      %s336 = scalar_select %p335, %s334, 5
      %s337 = smul.addr %s336, 4
      %s338 = scalar_lea.vmem %s2, %s337
      %s339 = smul.u32 2, %s27
      %s340 = smul.u32 2, %s27
      %p341 = scmp.lt.s32.totalorder %s340, 5
      %s342 = scalar_select %p341, %s340, 5
      %s343 = smul.addr %s342, 8
      %s344 = scalar_lea.vmem %s8, %s343
      %s345 = smul.u32 2, %s27
      %s346 = smul.u32 2, %s27
      %p347 = scmp.lt.s32.totalorder %s346, 5
      %s348 = scalar_select %p347, %s346, 5
      %s349 = smul.addr %s348, 4
      %s350 = scalar_lea.vmem %s9, %s349
      %s351 = smul.u32 2, %s27
      %v353 = vld [vmem:[%s338] sm:$0xf]
      %v354 = vld [vmem:[%s338 + $0x4] sm:$0xf]
      %v355 = vld [vmem:[%s332] sm:$0xff]
      %v356 = vld [vmem:[%s332 + $0x8] sm:$0xff]
      %v357 = vld [vmem:[%s3] sm:$0xf]
      %v358 = vld [vmem:[%s3 + $0x4] sm:$0xf]
      %v359 = vld [vmem:[%s3 + $0x8] sm:$0xf]
      %v360 = vld [vmem:[%s3 + $0xc] sm:$0xf]
      %v361 = vld [vmem:[%s5] sm:$0x1]
      %v363 = vlaneseq
      %v364 = vshrl.u32 %v363, 7
      %v365 = vsub.s32 0, %v364
      %v366 = vrot.slane %v361, %v365
      %v370 = vunpack.c.l.b16 %v353
      %v371 = vunpack.c.l.b16 %v354
      %v372 = vpack.c.b16 %v371, %v370
      %v377 = vunpack.c.l.b16 %v357
      %v378 = vunpack.c.l.b16 %v358
      %v379 = vunpack.c.l.b16 %v359
      %v380 = vunpack.c.l.b16 %v360
      %v381 = vpack.c.b16 %v378, %v377
      %v382 = vpack.c.b16 %v380, %v379
      %vm385 = vcmask 261120
      %v387 = vsel %vm385, %v372, 0
      %389 = vmatprep.subr.bf16.mxu0 0
      %390 = vmatpush1.bf16.msra.mxu0 0
      %391 = vmatprep.subr.bf16.mxu0 0
      %392 = vmatpush1.bf16.msra.mxu0 0
      %393 = vmatprep.subr.bf16.mxu0 0
      %394 = vmatpush1.bf16.msra.mxu0 0
      %395 = vmatprep.subr.bf16.mxu0 0
      %396 = vmatpush1.bf16.msra.mxu0 0
      %397 = vmatprep.subr.bf16.mxu0 0
      %398 = vmatpush1.bf16.msra.mxu0 0
      %399 = vmatprep.subr.bf16.mxu0 0
      %400 = vmatpush1.bf16.msra.mxu0 0
      %401 = vmatprep.subr.bf16.mxu0 0
      %402 = vmatpush1.bf16.msra.mxu0 %v382
      %403 = vmatprep.subr.bf16.mxu0 0
      %404 = vmatpush1.bf16.msra.mxu0 %v381
      %405 = vmatprep.subr.bf16.mxu0 0
      %406 = vmatpush2.bf16.msra.mxu0 0
      %407 = vmatprep.subr.bf16.mxu0 0
      %408 = vmatpush2.bf16.msra.mxu0 0
      %409 = vmatprep.subr.bf16.mxu0 0
      %410 = vmatpush2.bf16.msra.mxu0 0
      %411 = vmatprep.subr.bf16.mxu0 0
      %412 = vmatpush2.bf16.msra.mxu0 0
      %413 = vmatprep.subr.bf16.mxu0 0
      %414 = vmatpush2.bf16.msra.mxu0 0
      %415 = vmatprep.subr.bf16.mxu0 0
      %416 = vmatpush2.bf16.msra.mxu0 0
      %417 = vmatprep.subr.bf16.mxu0 0
      %418 = vmatpush2.bf16.msra.mxu0 0
      %419 = vmatprep.subr.bf16.mxu0 0
      %420 = vmatpush2.bf16.msra.mxu0 0
      %421 = vmatprep.mubr.bf16.mxu0 0
      %422 = vmatmul.mubr.bf16.gmra.mxu0 %v387
      %v423 = vpop.f32.mrf.mxu0
      %v424 = vadd.f32 %v366, %v423
      %v425 = vpop.f32.mrf.mxu0
      %v426 = vpop.f32.mrf.mxu0
      %v427 = vadd.f32 %v366, %v426
      %v428 = vpop.f32.mrf.mxu0
      %429 = vdwg.mxu0
      %v430 = vsub.f32 0.0, %v424
      %v431 = vsub.f32 0.0, %v427
      %v432 = vmul.f32 %v430, 1.442695
      %v433 = vpow.pop %v432
      %v434 = vmul.f32 %v431, 1.442695
      %v435 = vpow.pop %v434
      %v436 = vadd.f32 %v433, 1.0
      %v437 = vadd.f32 %v435, 1.0
      %v438 = vrcp.pop %v436
      %v439 = vmul.f32 1.0, %v438
      %v440 = vrcp.pop %v437
      %v441 = vmul.f32 1.0, %v440
      %v442 = vmul.f32 %v424, %v439
      %v443 = vmul.f32 %v427, %v441
      %v444 = vld [vmem:[%s6] sm:$0x1]
      %v446 = vlaneseq
      %v447 = vshrl.u32 %v446, 7
      %v448 = vsub.s32 0, %v447
      %v449 = vrot.slane %v444, %v448
      %v451 = vmul.f32 %v442, %v449
      %v452 = vmul.f32 %v443, %v449
      %453 = vadd.xlane.f32.xlu0 %v451
      %v454 = vpop.xlane.xlu0 %453
      %455 = vadd.xlane.f32.xlu0 %v452
      %v456 = vpop.xlane.xlu0 %455
      %v457 = vld [vmem:[%s7] sm:$0x1]
      %v459 = vlaneseq
      %v460 = vshrl.u32 %v459, 7
      %v461 = vsub.s32 0, %v460
      %v462 = vrot.slane %v457, %v461
      %v464 = vadd.f32 %v454, %v462
      %v465 = vadd.f32 %v456, %v462
      %v466 = vsub.f32 1.0, %v439
      %v467 = vsub.f32 1.0, %v441
      %v468 = vmul.f32 %v442, %v466
      %v469 = vmul.f32 %v443, %v467
      %v470 = vadd.f32 %v439, %v468
      %v471 = vadd.f32 %v441, %v469
      %v472 = vmul.f32 %v470, %v449
      %v473 = vmul.f32 %v471, %v449
      %v474 = vpack.c.bf16 %v473, %v472
      %v475 = vld [vmem:[%s4] sm:$0xf]
      %v476 = vld [vmem:[%s4 + $0x4] sm:$0xf]
      %v477 = vld [vmem:[%s4 + $0x8] sm:$0xf]
      %v478 = vld [vmem:[%s4 + $0xc] sm:$0xf]
      %v479 = vld [vmem:[%s4 + $0x10] sm:$0xf]
      %v480 = vld [vmem:[%s4 + $0x14] sm:$0xf]
      %v481 = vld [vmem:[%s4 + $0x18] sm:$0xf]
      %v482 = vld [vmem:[%s4 + $0x1c] sm:$0xf]
      %v483 = vld [vmem:[%s4 + $0x20] sm:$0xf]
      %v484 = vld [vmem:[%s4 + $0x24] sm:$0xf]
      %v485 = vld [vmem:[%s4 + $0x28] sm:$0xf]
      %v486 = vld [vmem:[%s4 + $0x2c] sm:$0xf]
      %v487 = vld [vmem:[%s4 + $0x30] sm:$0xf]
      %v488 = vld [vmem:[%s4 + $0x34] sm:$0xf]
      %v489 = vld [vmem:[%s4 + $0x38] sm:$0xf]
      %v490 = vld [vmem:[%s4 + $0x3c] sm:$0xf]
      %v507 = vunpack.c.l.b16 %v475
      %v508 = vunpack.c.l.b16 %v476
      %v509 = vunpack.c.l.b16 %v477
      %v510 = vunpack.c.l.b16 %v478
      %v511 = vunpack.c.l.b16 %v479
      %v512 = vunpack.c.l.b16 %v480
      %v513 = vunpack.c.l.b16 %v481
      %v514 = vunpack.c.l.b16 %v482
      %v515 = vunpack.c.l.b16 %v483
      %v516 = vunpack.c.l.b16 %v484
      %v517 = vunpack.c.l.b16 %v485
      %v518 = vunpack.c.l.b16 %v486
      %v519 = vunpack.c.l.b16 %v487
      %v520 = vunpack.c.l.b16 %v488
      %v521 = vunpack.c.l.b16 %v489
      %v522 = vunpack.c.l.b16 %v490
      %v523 = vpack.c.b16 %v508, %v507
      %v524 = vpack.c.b16 %v510, %v509
      %v525 = vpack.c.b16 %v512, %v511
      %v526 = vpack.c.b16 %v514, %v513
      %v527 = vpack.c.b16 %v516, %v515
      %v528 = vpack.c.b16 %v518, %v517
      %v529 = vpack.c.b16 %v520, %v519
      %v530 = vpack.c.b16 %v522, %v521
      %539 = vmatprep.subr.bf16.mxu0 0
      %540 = vmatpush1.bf16.msra.mxu0 %v530
      %541 = vmatprep.subr.bf16.mxu0 0
      %542 = vmatpush1.bf16.msra.mxu0 %v529
      %543 = vmatprep.subr.bf16.mxu0 0
      %544 = vmatpush1.bf16.msra.mxu0 %v528
      %545 = vmatprep.subr.bf16.mxu0 0
      %546 = vmatpush1.bf16.msra.mxu0 %v527
      %547 = vmatprep.subr.bf16.mxu0 0
      %548 = vmatpush1.bf16.msra.mxu0 %v526
      %549 = vmatprep.subr.bf16.mxu0 0
      %550 = vmatpush1.bf16.msra.mxu0 %v525
      %551 = vmatprep.subr.bf16.mxu0 0
      %552 = vmatpush1.bf16.msra.mxu0 %v524
      %553 = vmatprep.subr.bf16.mxu0 0
      %554 = vmatpush1.bf16.msra.mxu0 %v523
      %555 = vmatprep.subr.bf16.mxu0 0
      %556 = vmatpush2.bf16.msra.mxu0 0
      %557 = vmatprep.subr.bf16.mxu0 0
      %558 = vmatpush2.bf16.msra.mxu0 0
      %559 = vmatprep.subr.bf16.mxu0 0
      %560 = vmatpush2.bf16.msra.mxu0 0
      %561 = vmatprep.subr.bf16.mxu0 0
      %562 = vmatpush2.bf16.msra.mxu0 0
      %563 = vmatprep.subr.bf16.mxu0 0
      %564 = vmatpush2.bf16.msra.mxu0 0
      %565 = vmatprep.subr.bf16.mxu0 0
      %566 = vmatpush2.bf16.msra.mxu0 0
      %567 = vmatprep.subr.bf16.mxu0 0
      %568 = vmatpush2.bf16.msra.mxu0 0
      %569 = vmatprep.subr.bf16.mxu0 0
      %570 = vmatpush2.bf16.msra.mxu0 0
      %571 = vmatprep.mubr.bf16.mxu0 0
      %572 = vmatmul.mubr.bf16.gmra.mxu0 %v474
      %v573 = vpop.f32.mrf.mxu0
      %v574 = vadd.f32 0.0, %v573
      %v575 = vpop.f32.mrf.mxu0
      %v576 = vpop.f32.mrf.mxu0
      %v577 = vadd.f32 0.0, %v576
      %v578 = vpop.f32.mrf.mxu0
      %579 = vdwg.mxu0
      %s580 = sld [smem:[#allocation3]]
      %v581 = vstv %s580
      %vm582 = vcmp.eq.s32.totalorder %v355, %v581
      %vm583 = vcmp.eq.s32.totalorder %v356, %v581
      %v584 = vsel %vm582, 1, 0
      %v585 = vsel %vm583, 1, 0
      %v586 = vcvt.s32.f32 %v584
      %v587 = vcvt.s32.f32 %v585
      %v588 = vmul.f32 %v586, %v464
      %v589 = vmul.f32 %v587, %v465
      %v590 = vadd.f32 %v588, 0.0
      %v591 = vadd.f32 %v589, 0.0
      %593 = vset.pattern.permute.xlu0 0
      %594 = vperm.xlu0 %593, %v586
      %v595 = vpop.permute.xlu0 %594
      %598 = vset.pattern.permute.xlu0 0
      %599 = vperm.xlu0 %598, %v587
      %v600 = vpop.permute.xlu0 %599
      %v602 = vmul.f32 %v595, %v574
      %v603 = vmul.f32 %v600, %v577
      %v604 = vadd.f32 %v602, 0.0
      %v605 = vadd.f32 %v603, 0.0
      %s606 = scalar_lea.vmem %s3, 16
      %v607 = vld [vmem:[%s606] sm:$0xf]
      %v608 = vld [vmem:[%s606 + $0x4] sm:$0xf]
      %v609 = vld [vmem:[%s606 + $0x8] sm:$0xf]
      %v610 = vld [vmem:[%s606 + $0xc] sm:$0xf]
      %s611 = scalar_lea.vmem %s5, 1
      %v612 = vld [vmem:[%s611] sm:$0x1]
      %v614 = vlaneseq
      %v615 = vshrl.u32 %v614, 7
      %v616 = vsub.s32 0, %v615
      %v617 = vrot.slane %v612, %v616
      %v623 = vunpack.c.l.b16 %v607
      %v624 = vunpack.c.l.b16 %v608
      %v625 = vunpack.c.l.b16 %v609
      %v626 = vunpack.c.l.b16 %v610
      %v627 = vpack.c.b16 %v624, %v623
      %v628 = vpack.c.b16 %v626, %v625
      %631 = vmatprep.subr.bf16.mxu0 0
      %632 = vmatpush1.bf16.msra.mxu0 0
      %633 = vmatprep.subr.bf16.mxu0 0
      %634 = vmatpush1.bf16.msra.mxu0 0
      %635 = vmatprep.subr.bf16.mxu0 0
      %636 = vmatpush1.bf16.msra.mxu0 0
      %637 = vmatprep.subr.bf16.mxu0 0
      %638 = vmatpush1.bf16.msra.mxu0 0
      %639 = vmatprep.subr.bf16.mxu0 0
      %640 = vmatpush1.bf16.msra.mxu0 0
      %641 = vmatprep.subr.bf16.mxu0 0
      %642 = vmatpush1.bf16.msra.mxu0 0
      %643 = vmatprep.subr.bf16.mxu0 0
      %644 = vmatpush1.bf16.msra.mxu0 %v628
      %645 = vmatprep.subr.bf16.mxu0 0
      %646 = vmatpush1.bf16.msra.mxu0 %v627
      %647 = vmatprep.subr.bf16.mxu0 0
      %648 = vmatpush2.bf16.msra.mxu0 0
      %649 = vmatprep.subr.bf16.mxu0 0
      %650 = vmatpush2.bf16.msra.mxu0 0
      %651 = vmatprep.subr.bf16.mxu0 0
      %652 = vmatpush2.bf16.msra.mxu0 0
      %653 = vmatprep.subr.bf16.mxu0 0
      %654 = vmatpush2.bf16.msra.mxu0 0
      %655 = vmatprep.subr.bf16.mxu0 0
      %656 = vmatpush2.bf16.msra.mxu0 0
      %657 = vmatprep.subr.bf16.mxu0 0
      %658 = vmatpush2.bf16.msra.mxu0 0
      %659 = vmatprep.subr.bf16.mxu0 0
      %660 = vmatpush2.bf16.msra.mxu0 0
      %661 = vmatprep.subr.bf16.mxu0 0
      %662 = vmatpush2.bf16.msra.mxu0 0
      %663 = vmatprep.mubr.bf16.mxu0 0
      %664 = vmatmul.mubr.bf16.gmra.mxu0 %v387
      %v665 = vpop.f32.mrf.mxu0
      %v666 = vadd.f32 %v617, %v665
      %v667 = vpop.f32.mrf.mxu0
      %v668 = vpop.f32.mrf.mxu0
      %v669 = vadd.f32 %v617, %v668
      %v670 = vpop.f32.mrf.mxu0
      %671 = vdwg.mxu0
      %v672 = vsub.f32 0.0, %v666
      %v673 = vsub.f32 0.0, %v669
      %v674 = vmul.f32 %v672, 1.442695
      %v675 = vpow.pop %v674
      %v676 = vmul.f32 %v673, 1.442695
      %v677 = vpow.pop %v676
      %v678 = vadd.f32 %v675, 1.0
      %v679 = vadd.f32 %v677, 1.0
      %v680 = vrcp.pop %v678
      %v681 = vmul.f32 1.0, %v680
      %v682 = vrcp.pop %v679
      %v683 = vmul.f32 1.0, %v682
      %v684 = vmul.f32 %v666, %v681
      %v685 = vmul.f32 %v669, %v683
      %s686 = scalar_lea.vmem %s6, 1
      %v687 = vld [vmem:[%s686] sm:$0x1]
      %v689 = vlaneseq
      %v690 = vshrl.u32 %v689, 7
      %v691 = vsub.s32 0, %v690
      %v692 = vrot.slane %v687, %v691
      %v694 = vmul.f32 %v684, %v692
      %v695 = vmul.f32 %v685, %v692
      %696 = vadd.xlane.f32.xlu0 %v694
      %v697 = vpop.xlane.xlu0 %696
      %698 = vadd.xlane.f32.xlu0 %v695
      %v699 = vpop.xlane.xlu0 %698
      %s700 = scalar_lea.vmem %s7, 1
      %v701 = vld [vmem:[%s700] sm:$0x1]
      %v703 = vlaneseq
      %v704 = vshrl.u32 %v703, 7
      %v705 = vsub.s32 0, %v704
      %v706 = vrot.slane %v701, %v705
      %v708 = vadd.f32 %v697, %v706
      %v709 = vadd.f32 %v699, %v706
      %v710 = vsub.f32 1.0, %v681
      %v711 = vsub.f32 1.0, %v683
      %v712 = vmul.f32 %v684, %v710
      %v713 = vmul.f32 %v685, %v711
      %v714 = vadd.f32 %v681, %v712
      %v715 = vadd.f32 %v683, %v713
      %v716 = vmul.f32 %v714, %v692
      %v717 = vmul.f32 %v715, %v692
      %v718 = vpack.c.bf16 %v717, %v716
      %s719 = scalar_lea.vmem %s4, 64
      %v720 = vld [vmem:[%s719] sm:$0xf]
      %v721 = vld [vmem:[%s719 + $0x4] sm:$0xf]
      %v722 = vld [vmem:[%s719 + $0x8] sm:$0xf]
      %v723 = vld [vmem:[%s719 + $0xc] sm:$0xf]
      %v724 = vld [vmem:[%s719 + $0x10] sm:$0xf]
      %v725 = vld [vmem:[%s719 + $0x14] sm:$0xf]
      %v726 = vld [vmem:[%s719 + $0x18] sm:$0xf]
      %v727 = vld [vmem:[%s719 + $0x1c] sm:$0xf]
      %v728 = vld [vmem:[%s719 + $0x20] sm:$0xf]
      %v729 = vld [vmem:[%s719 + $0x24] sm:$0xf]
      %v730 = vld [vmem:[%s719 + $0x28] sm:$0xf]
      %v731 = vld [vmem:[%s719 + $0x2c] sm:$0xf]
      %v732 = vld [vmem:[%s719 + $0x30] sm:$0xf]
      %v733 = vld [vmem:[%s719 + $0x34] sm:$0xf]
      %v734 = vld [vmem:[%s719 + $0x38] sm:$0xf]
      %v735 = vld [vmem:[%s719 + $0x3c] sm:$0xf]
      %v752 = vunpack.c.l.b16 %v720
      %v753 = vunpack.c.l.b16 %v721
      %v754 = vunpack.c.l.b16 %v722
      %v755 = vunpack.c.l.b16 %v723
      %v756 = vunpack.c.l.b16 %v724
      %v757 = vunpack.c.l.b16 %v725
      %v758 = vunpack.c.l.b16 %v726
      %v759 = vunpack.c.l.b16 %v727
      %v760 = vunpack.c.l.b16 %v728
      %v761 = vunpack.c.l.b16 %v729
      %v762 = vunpack.c.l.b16 %v730
      %v763 = vunpack.c.l.b16 %v731
      %v764 = vunpack.c.l.b16 %v732
      %v765 = vunpack.c.l.b16 %v733
      %v766 = vunpack.c.l.b16 %v734
      %v767 = vunpack.c.l.b16 %v735
      %v768 = vpack.c.b16 %v753, %v752
      %v769 = vpack.c.b16 %v755, %v754
      %v770 = vpack.c.b16 %v757, %v756
      %v771 = vpack.c.b16 %v759, %v758
      %v772 = vpack.c.b16 %v761, %v760
      %v773 = vpack.c.b16 %v763, %v762
      %v774 = vpack.c.b16 %v765, %v764
      %v775 = vpack.c.b16 %v767, %v766
      %784 = vmatprep.subr.bf16.mxu0 0
      %785 = vmatpush1.bf16.msra.mxu0 %v775
      %786 = vmatprep.subr.bf16.mxu0 0
      %787 = vmatpush1.bf16.msra.mxu0 %v774
      %788 = vmatprep.subr.bf16.mxu0 0
      %789 = vmatpush1.bf16.msra.mxu0 %v773
      %790 = vmatprep.subr.bf16.mxu0 0
      %791 = vmatpush1.bf16.msra.mxu0 %v772
      %792 = vmatprep.subr.bf16.mxu0 0
      %793 = vmatpush1.bf16.msra.mxu0 %v771
      %794 = vmatprep.subr.bf16.mxu0 0
      %795 = vmatpush1.bf16.msra.mxu0 %v770
      %796 = vmatprep.subr.bf16.mxu0 0
      %797 = vmatpush1.bf16.msra.mxu0 %v769
      %798 = vmatprep.subr.bf16.mxu0 0
      %799 = vmatpush1.bf16.msra.mxu0 %v768
      %800 = vmatprep.subr.bf16.mxu0 0
      %801 = vmatpush2.bf16.msra.mxu0 0
      %802 = vmatprep.subr.bf16.mxu0 0
      %803 = vmatpush2.bf16.msra.mxu0 0
      %804 = vmatprep.subr.bf16.mxu0 0
      %805 = vmatpush2.bf16.msra.mxu0 0
      %806 = vmatprep.subr.bf16.mxu0 0
      %807 = vmatpush2.bf16.msra.mxu0 0
      %808 = vmatprep.subr.bf16.mxu0 0
      %809 = vmatpush2.bf16.msra.mxu0 0
      %810 = vmatprep.subr.bf16.mxu0 0
      %811 = vmatpush2.bf16.msra.mxu0 0
      %812 = vmatprep.subr.bf16.mxu0 0
      %813 = vmatpush2.bf16.msra.mxu0 0
      %814 = vmatprep.subr.bf16.mxu0 0
      %815 = vmatpush2.bf16.msra.mxu0 0
      %816 = vmatprep.mubr.bf16.mxu0 0
      %817 = vmatmul.mubr.bf16.gmra.mxu0 %v718
      %v818 = vpop.f32.mrf.mxu0
      %v819 = vadd.f32 0.0, %v818
      %v820 = vpop.f32.mrf.mxu0
      %v821 = vpop.f32.mrf.mxu0
      %v822 = vadd.f32 0.0, %v821
      %v823 = vpop.f32.mrf.mxu0
      %824 = vdwg.mxu0
      %s825 = sld [smem:[#allocation3 + $0x1]]
      %v826 = vstv %s825
      %vm827 = vcmp.eq.s32.totalorder %v355, %v826
      %vm828 = vcmp.eq.s32.totalorder %v356, %v826
      %v829 = vsel %vm827, 1, 0
      %v830 = vsel %vm828, 1, 0
      %v831 = vcvt.s32.f32 %v829
      %v832 = vcvt.s32.f32 %v830
      %v833 = vmul.f32 %v831, %v708
      %v834 = vmul.f32 %v832, %v709
      %v835 = vadd.f32 %v590, %v833
      %v836 = vadd.f32 %v591, %v834
      %838 = vset.pattern.permute.xlu0 0
      %839 = vperm.xlu0 %838, %v831
      %v840 = vpop.permute.xlu0 %839
      %843 = vset.pattern.permute.xlu0 0
      %844 = vperm.xlu0 %843, %v832
      %v845 = vpop.permute.xlu0 %844
      %v847 = vmul.f32 %v840, %v819
      %v848 = vmul.f32 %v845, %v822
      %v849 = vadd.f32 %v604, %v847
      %v850 = vadd.f32 %v605, %v848
      %vm851 = vcmask 7168
      %852 = vst.msk [vmem:[%s344] sm:$0xff] %vm851, %v835
      %853 = vst.msk [vmem:[%s344 + $0x8] sm:$0xff] %vm851, %v836
      %v854 = vpack.c.bf16 %v850, %v849
      %v856 = vunpack.c.l.b16 %v854
      %v857 = vunpack.c.h.b16 %v854
      %v858 = vpack.c.b16 %v856, %v856
      %v859 = vpack.c.b16 %v857, %v857
      %vm862 = vcmask 257024
      %863 = vst.msk [vmem:[%s350] sm:$0xf] %vm862, %v858
      %864 = vst.msk [vmem:[%s350 + $0x4] sm:$0xf] %vm862, %v859
      %s865 = smul.u32 2, %s27
      %p866 = scmp.lt.s32.totalorder %s865, 5
      %s867 = scalar_select %p866, %s865, 5
      %s868 = smul.addr %s867, 8
      %s869 = scalar_lea.vmem %s8, %s868
      %s870 = smul.u32 2, %s27
      %p871 = scmp.lt.s32.totalorder %s870, 5
      %s872 = scalar_select %p871, %s870, 5
      %s873 = smul.addr %s872, 4
      %s874 = scalar_lea.vmem %s9, %s873
      // Predicated region
      $region49: #{tpu_custom_call.1} parent=47 // pred_check
        %p875 = pneg %p202
      $region50: #{tpu_custom_call.1} parent=47 // pred_check_branch
        %877 = sbr.rel (%p875) target = $region52
      $region51: #{tpu_custom_call.1} parent=47 // pred_region
        %s878 = smul.u32 2, %s27
      $region52: #{tpu_custom_call.1} parent=47 // pred_fallthru
        _
      // Predicated region
      $region53: #{tpu_custom_call.1} parent=47 // pred_check
        %p879 = pneg %p228
      $region54: #{tpu_custom_call.1} parent=47 // pred_check_branch
        %881 = sbr.rel (%p879) target = $region56
      $region55: #{tpu_custom_call.1} parent=47 // pred_region
        %s882 = smul.u32 2, %s27
      $region56: #{tpu_custom_call.1} parent=47 // pred_fallthru
        _
    $region48: #{tpu_custom_call.1} parent=5 // pred_fallthru
      _
    %p883 = scmp.le.s32.totalorder 2, %s22
    // Predicated region
    $region57: #{tpu_custom_call.1} parent=5 // pred_check
      %p884 = pneg %p883
    $region58: #{tpu_custom_call.1} parent=5 // pred_check_branch
      %886 = sbr.rel (%p884) target = $region60
    $region59: #{tpu_custom_call.1} parent=5 // pred_region
      %s887 = ssub.s32 %s22, 2
      // Predicated region
      $region61: #{tpu_custom_call.1} parent=59 // pred_check
        %p888 = pneg %p208
      $region62: #{tpu_custom_call.1} parent=59 // pred_check_branch
        %890 = sbr.rel (%p888) target = $region64
      $region63: #{tpu_custom_call.1} parent=59 // pred_region
        %s891 = smul.u32 2, %s28
        %p892 = scmp.lt.s32.totalorder %s891, 5
        %s893 = scalar_select %p892, %s891, 5
        %s894 = smul.addr %s893, 8
        %s895 = scalar_lea.vmem %s8, %s894
      $region64: #{tpu_custom_call.1} parent=59 // pred_fallthru
        _
      // Predicated region
      $region65: #{tpu_custom_call.1} parent=59 // pred_check
        %p896 = pneg %p234
      $region66: #{tpu_custom_call.1} parent=59 // pred_check_branch
        %898 = sbr.rel (%p896) target = $region68
      $region67: #{tpu_custom_call.1} parent=59 // pred_region
        %s899 = smul.u32 2, %s28
        %p900 = scmp.lt.s32.totalorder %s899, 5
        %s901 = scalar_select %p900, %s899, 5
        %s902 = smul.addr %s901, 4
        %s903 = scalar_lea.vmem %s9, %s902
      $region68: #{tpu_custom_call.1} parent=59 // pred_fallthru
        _
    $region60: #{tpu_custom_call.1} parent=5 // pred_fallthru
      _
  $region6: #{tpu_custom_call.1} parent=0 // loop_footer
    %s26 = sadd.s32 1, %s22
  $region7: #{tpu_custom_call.1} parent=0 // loop_footer_branch
    %21 = sbr.rel target = $region3
  $region8: #{tpu_custom_call.1} parent=0 // loop_exit
    _

</llo_original>
